<compile_context>
chip_gen: v5e
topology: v5e:2x2
jax: 0.10.0
libtpu: 0.0.40
codegen_flags: <defaults>
</compile_context>

<pallas_src>
import numpy as np
import jax
import jax.numpy as jnp
from jax.experimental import pallas as pl
from jax.experimental.pallas import tpu as pltpu

NUM_CLASSES = 9
IGNORE_INDEX = 8          # matches F.cross_entropy(..., ignore_index=8) in the spec
MAX_M = 0.5
S = 35.0
DEFAULT_TILE_N = 32768    # samples per grid step (multiple of 512)


def _round_up(v, m):
    return (v + m - 1) // m * m


def _ldam_partial_kernel(n_ref, x_ref, tgt_ref, m_ref, w_ref, out_ref):
    """One batch tile: x (C, TILE_N) -> partial (num, den) packed into out_ref."""
    x = x_ref[...].astype(jnp.float32)   # (C, TN): classes on sublanes, batch on lanes
    tgt = tgt_ref[...]                   # (1, TN) i32
    m_s = m_ref[...]                     # (C, 1) f32, margins already scaled by S
    w = w_ref[...]                       # (C, 1) f32, per-class weights

    c, tn = x.shape

    # Ragged-tail validity mask: the last block may read past column n and the
    # out-of-bounds lanes contain garbage (possibly inf/NaN).  Mask BEFORE the
    # exp / log-sum-exp so invalid lanes stay finite; they are then dropped by
    # the weight mask below.
    col = pl.program_id(0) * tn + jax.lax.broadcasted_iota(jnp.int32, (1, tn), 1)
    in_bounds = col < n_ref[0]                                          # (1, TN)
    x = jnp.where(in_bounds, x, 0.0)
    tgt = jnp.where(in_bounds, tgt, IGNORE_INDEX)

    cls = jax.lax.broadcasted_iota(jnp.int32, (c, tn), 0)
    index = cls == tgt                                   # one-hot(target) mask

    # logits = S * (x - index * m[target])   (S folded into the margin on host)
    logits = S * x - jnp.where(index, m_s, 0.0)

    # numerically stable log-sum-exp over the class (sublane) axis
    mx = jnp.max(logits, axis=0, keepdims=True)                          # (1, TN)
    lse = jnp.log(jnp.sum(jnp.exp(logits - mx), axis=0, keepdims=True)) + mx

    # gather the target logit with the same mask (no full logp materialization)
    logit_t = jnp.sum(jnp.where(index, logits, 0.0), axis=0, keepdims=True)
    nll = lse - logit_t                                                  # (1, TN)

    # per-sample class weight; invalid/ignored samples drop out of num and den
    w_t = jnp.sum(jnp.where(index, w, 0.0), axis=0, keepdims=True)       # (1, TN)
    valid = (tgt != IGNORE_INDEX).astype(jnp.float32)                    # (1, TN)
    wv = w_t * valid

    num = jnp.sum(nll * wv)      # partial weighted NLL
    den = jnp.sum(wv)            # partial weight normalizer

    # Pack the two partial scalars into a lane-dense (8,128) output block:
    # sublane 0 carries num, the remaining sublanes carry den.  The host-side
    # reduction reads [i, 0, 0] (num) and [i, 1, 0] (den) -- keep in sync.
    sub = jax.lax.broadcasted_iota(jnp.int32, (1, 8, 128), 1)
    out_ref[...] = jnp.where(sub == 0, num, den)


def ldam_loss_cn(x_cn, target, m_list, weight, *, tile_n=DEFAULT_TILE_N):
    """x_cn: (C, N) logits (lane-dense layout), target: (N,) int -> scalar f32."""
    c, n = x_cn.shape

    # v7x has 2 TensorCores: cap the tile so the grid has >= 2 steps for large
    # N, keep it a multiple of 512, and never exceed DEFAULT_TILE_N so the
    # double-buffered working set (~6-7 MiB at 32K) stays well inside the
    # 64 MiB/TC v7x VMEM (and the 32 MiB scoped limit on all generations).
    tile_n = max(512, min(tile_n, _round_up(pl.cdiv(max(n, 1), 2), 512)))
    grid = pl.cdiv(n, tile_n)

    n_arr = jnp.asarray([n], jnp.int32)                       # scalar prefetch (SMEM)
    tgt2d = target.astype(jnp.int32).reshape(1, n)
    m2d = (S * m_list.astype(jnp.float32)).reshape(c, 1)      # fold s into the margin
    w2d = weight.astype(jnp.float32).reshape(c, 1)

    cost = pl.CostEstimate(
        flops=12 * n * c,
        transcendentals=n * (c + 1),
        bytes_accessed=int(x_cn.dtype.itemsize) * n * c + 4 * n + 8 * c
                       + grid * 8 * 128 * 4,
    )

    parts = pl.pallas_call(
        _ldam_partial_kernel,
        out_shape=jax.ShapeDtypeStruct((grid, 8, 128), jnp.float32),
        grid_spec=pltpu.PrefetchScalarGridSpec(
            num_scalar_prefetch=1,
            grid=(grid,),
            in_specs=[
                pl.BlockSpec((c, tile_n), lambda i, n_ref: (0, i)),   # x tile (C, TN)
                pl.BlockSpec((1, tile_n), lambda i, n_ref: (0, i)),   # targets tile
                pl.BlockSpec((c, 1), lambda i, n_ref: (0, 0)),        # scaled margins
                pl.BlockSpec((c, 1), lambda i, n_ref: (0, 0)),        # class weights
            ],
            out_specs=pl.BlockSpec((1, 8, 128), lambda i, n_ref: (i, 0, 0)),
        ),
        compiler_params=pltpu.CompilerParams(
            dimension_semantics=("parallel",),                 # both TCs on v7x
            vmem_limit_bytes=32 * 1024 * 1024,
        ),
        cost_estimate=cost,
    )(n_arr, x_cn, tgt2d, m2d, w2d)

    num = jnp.sum(parts[:, 0, 0])
    den = jnp.sum(parts[:, 1, 0])
    # Matches PyTorch: if every sample is ignored, den == 0 and the result is NaN.
    return num / den


def ldam_loss(x, target, m_list, weight, *, tile_n=DEFAULT_TILE_N):
    """x: (N, C) as in the PyTorch module.  This entry performs one relayout
    to the lane-dense (C, N) working layout; if the producer can emit (C, N)
    directly, call ldam_loss_cn() and skip even that."""
    return ldam_loss_cn(x.T, target, m_list, weight, tile_n=tile_n)


def _ldam_loss_ref(x, target, m_list, weight):
    """Pure-JAX reference of the PyTorch forward (for a correctness check)."""
    n, c = x.shape
    index = jax.nn.one_hot(target, c, dtype=jnp.float32)
    batch_m = (index * m_list[None, :]).sum(axis=1, keepdims=True)
    logits = S * jnp.where(index > 0, x - batch_m, x)
    logp = jax.nn.log_softmax(logits, axis=1)
    nll = -(index * logp).sum(axis=1)
    w_t = (index * weight[None, :]).sum(axis=1)
    valid = (target != IGNORE_INDEX).astype(jnp.float32)
    return jnp.sum(nll * w_t * valid) / jnp.sum(w_t * valid)


def make_params():
    # Deterministic synthetic parameter init (the reference uses zeros for
    # cls_num_list which is degenerate -- 1/sqrt(sqrt(0)) is inf -- so use
    # positive counts instead).
    cls_num_list = np.arange(1, NUM_CLASSES + 1, dtype=np.float64) * 10.0   # (9,)
    m_list = 1.0 / np.sqrt(np.sqrt(cls_num_list))
    m_list = m_list * (MAX_M / np.max(m_list))
    weight = 1.0 + 0.1 * np.arange(NUM_CLASSES, dtype=np.float64)           # (9,)
    return jnp.asarray(m_list, jnp.float32), jnp.asarray(weight, jnp.float32)


if __name__ == "__main__":
    key = jax.random.PRNGKey(0)
    kx, kt = jax.random.split(key)

    N = 13   # deliberately ragged vs the 512-wide tile to exercise the tail mask
    x = jax.random.normal(kx, (N, NUM_CLASSES), dtype=jnp.float32)
    target = jax.random.randint(kt, (N,), 0, NUM_CLASSES, dtype=jnp.int32)
    target = target.at[0].set(0)              # guarantee at least one valid sample
    target = target.at[1].set(IGNORE_INDEX)   # exercise ignore_index path

    m_list, weight = make_params()

    loss = ldam_loss(x, target, m_list, weight)
    jax.block_until_ready(loss)

    ref = _ldam_loss_ref(x, target, m_list, weight)
    np.testing.assert_allclose(np.asarray(loss), np.asarray(ref),
                               rtol=1e-4, atol=1e-5)

    print("KERNEL_OK")
</pallas_src>

<mosaic_0001>
module attributes {stable_mosaic.version = 11 : i64} {
  func.func @_ldam_partial_kernel(%arg0: i32, %arg1: memref<1xi32, #tpu.memory_space<smem>>, %arg2: memref<9x512xf32, #tpu.memory_space<vmem>>, %arg3: memref<1x512xi32, #tpu.memory_space<vmem>>, %arg4: memref<9x1xf32, #tpu.memory_space<vmem>>, %arg5: memref<9x1xf32, #tpu.memory_space<vmem>>, %arg6: memref<1x8x128xf32, #tpu.memory_space<vmem>>) attributes {dimension_semantics = [#tpu.dimension_semantics<parallel>], iteration_bounds = array<i64: 1>, scalar_prefetch = 1 : i64, scratch_operands = 0 : i64, tpu.core_type = #tpu.core_type<tc>, window_params = [{transform_indices = @transform_0, window_bounds = array<i64: 9, 512>}, {transform_indices = @transform_1, window_bounds = array<i64: 1, 512>}, {pipeline_mode = #tpu.pipeline_mode<synchronous>, transform_indices = @transform_2, window_bounds = array<i64: 9, 1>}, {pipeline_mode = #tpu.pipeline_mode<synchronous>, transform_indices = @transform_3, window_bounds = array<i64: 9, 1>}, {transform_indices = @transform_4, window_bounds = array<i64: 1, 8, 128>}]} {
    %c0 = arith.constant 0 : index
    %c0_0 = arith.constant 0 : index
    %0 = vector.load %arg2[%c0, %c0_0] : memref<9x512xf32, #tpu.memory_space<vmem>>, vector<9x512xf32>
    %c0_1 = arith.constant 0 : index
    %c0_2 = arith.constant 0 : index
    %1 = vector.load %arg3[%c0_1, %c0_2] : memref<1x512xi32, #tpu.memory_space<vmem>>, vector<1x512xi32>
    %c0_3 = arith.constant 0 : index
    %c0_4 = arith.constant 0 : index
    %2 = vector.load %arg4[%c0_3, %c0_4] : memref<9x1xf32, #tpu.memory_space<vmem>>, vector<9x1xf32>
    %c0_5 = arith.constant 0 : index
    %c0_6 = arith.constant 0 : index
    %3 = vector.load %arg5[%c0_5, %c0_6] : memref<9x1xf32, #tpu.memory_space<vmem>>, vector<9x1xf32>
    %c512_i32 = arith.constant 512 : i32
    %4 = arith.muli %arg0, %c512_i32 : i32
    %5 = tpu.iota {dimensions = array<i32: 1>} : vector<1x512xi32>
    %6 = vector.broadcast %4 : i32 to vector<1x512xi32>
    %7 = arith.addi %6, %5 : vector<1x512xi32>
    %c0_7 = arith.constant 0 : index
    %8 = memref.load %arg1[%c0_7] : memref<1xi32, #tpu.memory_space<smem>>
    %9 = vector.broadcast %8 : i32 to vector<1x512xi32>
    %10 = arith.cmpi slt, %7, %9 : vector<1x512xi32>
    %cst = arith.constant 0.000000e+00 : f32
    %11 = vector.shape_cast %10 : vector<1x512xi1> to vector<1x512xi1>
    %12 = vector.broadcast %11 : vector<1x512xi1> to vector<9x512xi1>
    %13 = vector.broadcast %cst : f32 to vector<9x512xf32>
    %14 = arith.select %12, %0, %13 : vector<9x512xi1>, vector<9x512xf32>
    %c8_i32 = arith.constant 8 : i32
    %15 = vector.broadcast %c8_i32 : i32 to vector<1x512xi32>
    %16 = arith.select %10, %1, %15 : vector<1x512xi1>, vector<1x512xi32>
    %17 = tpu.iota {dimensions = array<i32: 0>} : vector<9x512xi32>
    %18 = vector.broadcast %16 : vector<1x512xi32> to vector<9x512xi32>
    %19 = arith.cmpi eq, %17, %18 : vector<9x512xi32>
    %cst_8 = arith.constant 3.500000e+01 : f32
    %20 = vector.broadcast %cst_8 : f32 to vector<9x512xf32>
    %21 = arith.mulf %20, %14 : vector<9x512xf32>
    %cst_9 = arith.constant 0.000000e+00 : f32
    %22 = vector.shape_cast %2 : vector<9x1xf32> to vector<9x1xf32>
    %23 = vector.broadcast %22 : vector<9x1xf32> to vector<9x512xf32>
    %24 = vector.broadcast %cst_9 : f32 to vector<9x512xf32>
    %25 = arith.select %19, %23, %24 : vector<9x512xi1>, vector<9x512xf32>
    %26 = arith.subf %21, %25 : vector<9x512xf32>
    %cst_10 = arith.constant dense<0xFF800000> : vector<512xf32>
    %27 = vector.multi_reduction <maximumf>, %26, %cst_10 [0] : vector<9x512xf32> to vector<512xf32>
    %28 = vector.shape_cast %27 : vector<512xf32> to vector<1x512xf32>
    %29 = vector.broadcast %28 : vector<1x512xf32> to vector<9x512xf32>
    %30 = arith.subf %26, %29 : vector<9x512xf32>
    %31 = math.exp %30 : vector<9x512xf32>
    %cst_11 = arith.constant dense<0.000000e+00> : vector<512xf32>
    %32 = vector.multi_reduction <add>, %31, %cst_11 [0] : vector<9x512xf32> to vector<512xf32>
    %33 = vector.shape_cast %32 : vector<512xf32> to vector<1x512xf32>
    %34 = math.log %33 : vector<1x512xf32>
    %35 = arith.addf %34, %28 : vector<1x512xf32>
    %cst_12 = arith.constant 0.000000e+00 : f32
    %36 = vector.broadcast %cst_12 : f32 to vector<9x512xf32>
    %37 = arith.select %19, %26, %36 : vector<9x512xi1>, vector<9x512xf32>
    %cst_13 = arith.constant dense<0.000000e+00> : vector<512xf32>
    %38 = vector.multi_reduction <add>, %37, %cst_13 [0] : vector<9x512xf32> to vector<512xf32>
    %39 = vector.shape_cast %38 : vector<512xf32> to vector<1x512xf32>
    %40 = arith.subf %35, %39 : vector<1x512xf32>
    %cst_14 = arith.constant 0.000000e+00 : f32
    %41 = vector.shape_cast %3 : vector<9x1xf32> to vector<9x1xf32>
    %42 = vector.broadcast %41 : vector<9x1xf32> to vector<9x512xf32>
    %43 = vector.broadcast %cst_14 : f32 to vector<9x512xf32>
    %44 = arith.select %19, %42, %43 : vector<9x512xi1>, vector<9x512xf32>
    %cst_15 = arith.constant dense<0.000000e+00> : vector<512xf32>
    %45 = vector.multi_reduction <add>, %44, %cst_15 [0] : vector<9x512xf32> to vector<512xf32>
    %46 = vector.shape_cast %45 : vector<512xf32> to vector<1x512xf32>
    %c8_i32_16 = arith.constant 8 : i32
    %47 = vector.broadcast %c8_i32_16 : i32 to vector<1x512xi32>
    %48 = arith.cmpi ne, %16, %47 : vector<1x512xi32>
    %49 = arith.extui %48 : vector<1x512xi1> to vector<1x512xi32>
    %50 = arith.sitofp %49 : vector<1x512xi32> to vector<1x512xf32>
    %51 = arith.mulf %46, %50 : vector<1x512xf32>
    %52 = arith.mulf %40, %51 : vector<1x512xf32>
    %53 = vector.shape_cast %52 : vector<1x512xf32> to vector<1x1x512xf32>
    %cst_17 = arith.constant dense<0.000000e+00> : vector<1xf32>
    %54 = vector.multi_reduction <add>, %53, %cst_17 [1, 2] : vector<1x1x512xf32> to vector<1xf32>
    %55 = vector.shape_cast %54 : vector<1xf32> to vector<1x1x1xf32>
    %56 = vector.extract %55[0, 0, 0] : f32 from vector<1x1x1xf32>
    %57 = vector.shape_cast %51 : vector<1x512xf32> to vector<1x1x512xf32>
    %cst_18 = arith.constant dense<0.000000e+00> : vector<1xf32>
    %58 = vector.multi_reduction <add>, %57, %cst_18 [1, 2] : vector<1x1x512xf32> to vector<1xf32>
    %59 = vector.shape_cast %58 : vector<1xf32> to vector<1x1x1xf32>
    %60 = vector.extract %59[0, 0, 0] : f32 from vector<1x1x1xf32>
    %61 = tpu.iota {dimensions = array<i32: 1>} : vector<1x8x128xi32>
    %c0_i32 = arith.constant 0 : i32
    %62 = vector.broadcast %c0_i32 : i32 to vector<1x8x128xi32>
    %63 = arith.cmpi eq, %61, %62 : vector<1x8x128xi32>
    %64 = vector.broadcast %56 : f32 to vector<1x8x128xf32>
    %65 = vector.broadcast %60 : f32 to vector<1x8x128xf32>
    %66 = arith.select %63, %64, %65 : vector<1x8x128xi1>, vector<1x8x128xf32>
    %c0_19 = arith.constant 0 : index
    %c0_20 = arith.constant 0 : index
    %c0_21 = arith.constant 0 : index
    %67 = vector.load %arg6[%c0_19, %c0_20, %c0_21] : memref<1x8x128xf32, #tpu.memory_space<vmem>>, vector<1x8x128xf32>
    tpu.vector_store %arg6[%c0_19, %c0_20, %c0_21], %66 {strides = array<i32>} : memref<1x8x128xf32, #tpu.memory_space<vmem>>, vector<1x8x128xf32>,
    return
  }
  func.func @transform_0(%arg0: i32, %arg1: memref<1xi32, #tpu.memory_space<smem>>) -> (i32, i32) {
    %c0_i32 = arith.constant 0 : i32
    %c0_i32_0 = arith.constant 0 : i32
    return %c0_i32, %arg0 : i32, i32
  }
  func.func @transform_1(%arg0: i32, %arg1: memref<1xi32, #tpu.memory_space<smem>>) -> (i32, i32) {
    %c0_i32 = arith.constant 0 : i32
    %c0_i32_0 = arith.constant 0 : i32
    return %c0_i32, %arg0 : i32, i32
  }
  func.func @transform_2(%arg0: i32, %arg1: memref<1xi32, #tpu.memory_space<smem>>) -> (i32, i32) {
    %c0_i32 = arith.constant 0 : i32
    %c0_i32_0 = arith.constant 0 : i32
    %c0_i32_1 = arith.constant 0 : i32
    return %c0_i32, %c0_i32_0 : i32, i32
  }
  func.func @transform_3(%arg0: i32, %arg1: memref<1xi32, #tpu.memory_space<smem>>) -> (i32, i32) {
    %c0_i32 = arith.constant 0 : i32
    %c0_i32_0 = arith.constant 0 : i32
    %c0_i32_1 = arith.constant 0 : i32
    return %c0_i32, %c0_i32_0 : i32, i32
  }
  func.func @transform_4(%arg0: i32, %arg1: memref<1xi32, #tpu.memory_space<smem>>) -> (i32, i32, i32) {
    %c0_i32 = arith.constant 0 : i32
    %c0_i32_0 = arith.constant 0 : i32
    %c0_i32_1 = arith.constant 0 : i32
    return %arg0, %c0_i32, %c0_i32_0 : i32, i32, i32
  }
}

</mosaic_0001>

<llo_original>
// kernel: tpu_custom_call.1
$region0: #{tpu_custom_call.1}
  #allocation0 [shape = 'u32[]', space=smem, size = 0x4, offset = 0x4, fixed_abs, tag = 'smem constant byte address 0x4 - core index']
  #allocation1 [shape = 'u32[72,128]{1,0:T(1,128)}', space=vmem, size = 0x9000, scoped, tag = 'internal scratch']
  #allocation2 [shape = 's32[1]{0}', space=sflag, size = 0x4, scoped, tag = 'scoped memory for tpu_custom_call.1']
  #allocation3 [shape = 's32[1]{0:T(128)S(6)}', space=smem, size = 0x200, scoped, tag = 'prefetched SMEM operand 0']
  %s0 = inlined_call_operand.<no memory space> [shape: s32[1], index: 0, kind: input, shape index: {}]
  %s1 = inlined_call_operand.vmem [shape: f32[9,13], index: 1, kind: input, shape index: {}]
  %s2 = inlined_call_operand.vmem [shape: s32[1,13], index: 2, kind: input, shape index: {}]
  %s3 = inlined_call_operand.vmem [shape: f32[9,1], index: 3, kind: input, shape index: {}]
  %s4 = inlined_call_operand.vmem [shape: f32[9,1], index: 4, kind: input, shape index: {}]
  %s5 = inlined_call_operand.hbm [shape: f32[1,8,128], index: 5, kind: output, shape index: {}]
  %s6 = sld [smem:[#allocation0]]
  $region64: #{tpu_custom_call.1} parent=0
    _
  %s8 = ssub.s32 1, %s6
  %s9 = scalar_select 0, %s8, %s6
  %10 = sst [smem:[#allocation3]] %s0
  $region1: #{tpu_custom_call.1} parent=0
    #allocation4 [shape = 'u8[32768]{0}', space=vmem, size = 0x8000, scoped, tag = 'input window, operand 1, single buffered']
    #allocation5 [shape = 'u8[4096]{0}', space=vmem, size = 0x1000, scoped, tag = 'output window, operand 0, single buffered']
    #allocation6 [shape = 's32[1]{0}', space=sflag, size = 0x4, scoped, tag = 'scoped memory for tpu_custom_call.1']
    %11 = vsyncpa [#allocation6], 0
    // Predicated region
    $region2: #{tpu_custom_call.1} parent=1 // pred_check
      _
    $region3: #{tpu_custom_call.1} parent=1 // pred_check_branch
      %13 = sbr.rel (0) target = $region5
    $region4: #{tpu_custom_call.1} parent=1 // pred_region
      // Predicated region
      $region6: #{tpu_custom_call.1} parent=4 // pred_check
        _
      $region7: #{tpu_custom_call.1} parent=4 // pred_check_branch
        %15 = sbr.rel (0) target = $region9
      $region8: #{tpu_custom_call.1} parent=4 // pred_region
        // Predicated region
        $region10: #{tpu_custom_call.1} parent=8 // pred_check
          _
        $region11: #{tpu_custom_call.1} parent=8 // pred_check_branch
          %17 = sbr.rel (0) target = $region13
        $region12: #{tpu_custom_call.1} parent=8 // pred_region
          // Predicated region
          $region25: #{tpu_custom_call.1} parent=12 // pred_check
            _
          $region26: #{tpu_custom_call.1} parent=12 // pred_check_branch
            %35 = sbr.rel (0) target = $region28
          $region27: #{tpu_custom_call.1} parent=12 // pred_region
            loop: start=0, step=1, limit=1
            $region29: #{tpu_custom_call.1} parent=27 // loop_pre_header
              _
            $region30: #{tpu_custom_call.1} parent=27 // loop_header
              %s37 = sphi 0, %s41
              %p38 = scmp.ge.s32.totalorder %s37, 1
              %s42 = sphi %s1, %s1
              %s43 = sphi [#allocation4], [#allocation4]
            $region31: #{tpu_custom_call.1} parent=27 // loop_header_branch
              %40 = sbr.rel (%p38) target = $region35
            $region32: #{tpu_custom_call.1} parent=27 // loop_body
              %v44 = vld [vmem:[%s42] sm:$0xff]
              %45 = vst [vmem:[%s43] sm:$0xff] %v44
              %v46 = vld [vmem:[%s42 + $0x8] sm:$0xff]
              %47 = vst [vmem:[%s43 + $0x20] sm:$0xff] %v46
            $region33: #{tpu_custom_call.1} parent=27 // loop_footer
              %s41 = sadd.s32 1, %s37
            $region34: #{tpu_custom_call.1} parent=27 // loop_footer_branch
              %36 = sbr.rel target = $region30
            $region35: #{tpu_custom_call.1} parent=27 // loop_exit
              _
          $region28: #{tpu_custom_call.1} parent=12 // pred_fallthru
            _
          // Predicated region
          $region36: #{tpu_custom_call.1} parent=12 // pred_check
            _
          $region37: #{tpu_custom_call.1} parent=12 // pred_check_branch
            %49 = sbr.rel target = $region39
          $region38: #{tpu_custom_call.1} parent=12 // pred_region
            _
          $region39: #{tpu_custom_call.1} parent=12 // pred_fallthru
            _
        $region13: #{tpu_custom_call.1} parent=8 // pred_fallthru
          _
        // Predicated region
        $region14: #{tpu_custom_call.1} parent=8 // pred_check
          _
        $region15: #{tpu_custom_call.1} parent=8 // pred_check_branch
          %19 = sbr.rel target = $region17
        $region16: #{tpu_custom_call.1} parent=8 // pred_region
          %s21 = ssub.s32 256, 1
          loop: start=0, step=1, limit=1
          $region18: #{tpu_custom_call.1} parent=16 // loop_pre_header
            _
          $region19: #{tpu_custom_call.1} parent=16 // loop_header
            %s23 = sphi 0, %s27
            %p24 = scmp.ge.s32.totalorder %s23, 1
            %s28 = sphi %s1, %s1
            %s29 = sphi [#allocation4], [#allocation4]
          $region20: #{tpu_custom_call.1} parent=16 // loop_header_branch
            %26 = sbr.rel (%p24) target = $region24
          $region21: #{tpu_custom_call.1} parent=16 // loop_body
            %v30 = vld [vmem:[%s28] sm:%s21]
            %31 = vst [vmem:[%s29] sm:%s21] %v30
            %v32 = vld [vmem:[%s28 + $0x8] sm:%s21]
            %33 = vst [vmem:[%s29 + $0x20] sm:%s21] %v32
          $region22: #{tpu_custom_call.1} parent=16 // loop_footer
            %s27 = sadd.s32 1, %s23
          $region23: #{tpu_custom_call.1} parent=16 // loop_footer_branch
            %22 = sbr.rel target = $region19
          $region24: #{tpu_custom_call.1} parent=16 // loop_exit
            _
        $region17: #{tpu_custom_call.1} parent=8 // pred_fallthru
          _
      $region9: #{tpu_custom_call.1} parent=4 // pred_fallthru
        _
      %50 = vnop
    $region5: #{tpu_custom_call.1} parent=1 // pred_fallthru
      _
    // Predicated region
    $region40: #{tpu_custom_call.1} parent=1 // pred_check
      _
    $region41: #{tpu_custom_call.1} parent=1 // pred_check_branch
      %52 = sbr.rel (0) target = $region43
    $region42: #{tpu_custom_call.1} parent=1 // pred_region
      _
    $region43: #{tpu_custom_call.1} parent=1 // pred_fallthru
      _
    // Predicated region
    $region44: #{tpu_custom_call.1} parent=1 // pred_check
      _
    $region45: #{tpu_custom_call.1} parent=1 // pred_check_branch
      %54 = sbr.rel (0) target = $region47
    $region46: #{tpu_custom_call.1} parent=1 // pred_region
      _
    $region47: #{tpu_custom_call.1} parent=1 // pred_fallthru
      _
    // Predicated region
    $region48: #{tpu_custom_call.1} parent=1 // pred_check
      _
    $region49: #{tpu_custom_call.1} parent=1 // pred_check_branch
      %56 = sbr.rel (0) target = $region51
    $region50: #{tpu_custom_call.1} parent=1 // pred_region
      _
    $region51: #{tpu_custom_call.1} parent=1 // pred_fallthru
      _
    // Predicated region
    $region52: #{tpu_custom_call.1} parent=1 // pred_check
      _
    $region53: #{tpu_custom_call.1} parent=1 // pred_check_branch
      %58 = sbr.rel (0) target = $region55
    $region54: #{tpu_custom_call.1} parent=1 // pred_region
      _
    $region55: #{tpu_custom_call.1} parent=1 // pred_fallthru
      _
    %v59 = vld [vmem:[#allocation4] sm:$0xff]
    %v60 = vld [vmem:[#allocation4 + $0x8] sm:$0xff]
    %v61 = vld [vmem:[#allocation4 + $0x10] sm:$0xff]
    %v62 = vld [vmem:[#allocation4 + $0x18] sm:$0xff]
    %v63 = vld [vmem:[#allocation4 + $0x20] sm:$0x1]
    %v64 = vld [vmem:[#allocation4 + $0x28] sm:$0x1]
    %v65 = vld [vmem:[#allocation4 + $0x30] sm:$0x1]
    %v66 = vld [vmem:[#allocation4 + $0x38] sm:$0x1]
    %v67 = vld [vmem:[%s2] sm:$0xf]
    %v68 = vld [vmem:[%s3] sm:$0xff]
    %v69 = vld [vmem:[%s3 + $0x8] sm:$0x1]
    %v70 = vld [vmem:[%s4] sm:$0xff]
    %v71 = vld [vmem:[%s4 + $0x8] sm:$0x1]
    %s72 = smul.u32 0, 512
    %v73 = vlaneseq
    %v74 = vand.u32 %v73, 127
    %v75 = vadd.s32 %v74, 128
    %v76 = vadd.s32 %v74, 256
    %v77 = vadd.s32 %v74, 384
    %v78 = vstv %s72
    %v79 = vadd.s32 %v78, %v74
    %v80 = vadd.s32 %v78, %v75
    %v81 = vadd.s32 %v78, %v76
    %v82 = vadd.s32 %v78, %v77
    %s83 = sld [smem:[#allocation3]]
    %v84 = vstv %s83
    %vm85 = vcmp.lt.s32.totalorder %v79, %v84
    %vm86 = vcmp.lt.s32.totalorder %v80, %v84
    %vm87 = vcmp.lt.s32.totalorder %v81, %v84
    %vm88 = vcmp.lt.s32.totalorder %v82, %v84
    %v89 = vsel %vm85, 1, 0
    %v90 = vsel %vm86, 1, 0
    %v91 = vsel %vm87, 1, 0
    %v92 = vsel %vm88, 1, 0
    %vm93 = vcmp.eq.s32.totalorder %v89, 1
    %vm94 = vcmp.eq.s32.totalorder %v90, 1
    %vm95 = vcmp.eq.s32.totalorder %v91, 1
    %vm96 = vcmp.eq.s32.totalorder %v92, 1
    %v97 = vsel %vm93, %v59, 0.0
    %v98 = vsel %vm94, %v60, 0.0
    %v99 = vsel %vm95, %v61, 0.0
    %v100 = vsel %vm96, %v62, 0.0
    %v101 = vsel %vm93, %v63, 0.0
    %v102 = vsel %vm94, %v64, 0.0
    %v103 = vsel %vm95, %v65, 0.0
    %v104 = vsel %vm96, %v66, 0.0
    %v105 = vperm.slane %v67, 0
    %v106 = vperm.slane %v67, 1
    %v107 = vperm.slane %v67, 2
    %v108 = vperm.slane %v67, 3
    %v109 = vsel %vm85, %v105, 8
    %v110 = vsel %vm86, %v106, 8
    %v111 = vsel %vm87, %v107, 8
    %v112 = vsel %vm88, %v108, 8
    %v113 = vlaneseq
    %v114 = vshrl.u32 %v113, 7
    %v115 = vadd.s32 %v114, 8
    %v116 = vperm.slane %v109, 0
    %v117 = vperm.slane %v110, 0
    %v118 = vperm.slane %v111, 0
    %v119 = vperm.slane %v112, 0
    %vm120 = vcmp.eq.s32.totalorder %v114, %v116
    %vm121 = vcmp.eq.s32.totalorder %v114, %v117
    %vm122 = vcmp.eq.s32.totalorder %v114, %v118
    %vm123 = vcmp.eq.s32.totalorder %v114, %v119
    %vm124 = vcmp.eq.s32.totalorder %v115, %v116
    %vm125 = vcmp.eq.s32.totalorder %v115, %v117
    %vm126 = vcmp.eq.s32.totalorder %v115, %v118
    %vm127 = vcmp.eq.s32.totalorder %v115, %v119
    %v128 = vmul.f32 %v97, 35.0
    %v129 = vmul.f32 %v98, 35.0
    %v130 = vmul.f32 %v99, 35.0
    %v131 = vmul.f32 %v100, 35.0
    %v132 = vmul.f32 %v101, 35.0
    %v133 = vmul.f32 %v102, 35.0
    %v134 = vmul.f32 %v103, 35.0
    %v135 = vmul.f32 %v104, 35.0
    %137 = vset.pattern.permute.xlu0 0
    %138 = vperm.xlu0 %137, %v68
    %v139 = vpop.permute.xlu0 %138
    %142 = vset.pattern.permute.xlu0 0
    %143 = vperm.xlu0 %142, %v69
    %v144 = vpop.permute.xlu0 %143
    %v146 = vsel %vm120, %v139, 0.0
    %v147 = vsel %vm121, %v139, 0.0
    %v148 = vsel %vm122, %v139, 0.0
    %v149 = vsel %vm123, %v139, 0.0
    %v150 = vsel %vm124, %v144, 0.0
    %v151 = vsel %vm125, %v144, 0.0
    %v152 = vsel %vm126, %v144, 0.0
    %v153 = vsel %vm127, %v144, 0.0
    %v154 = vsub.f32 %v128, %v146
    %v155 = vsub.f32 %v129, %v147
    %v156 = vsub.f32 %v130, %v148
    %v157 = vsub.f32 %v131, %v149
    %v158 = vsub.f32 %v132, %v150
    %v159 = vsub.f32 %v133, %v151
    %v160 = vsub.f32 %v134, %v152
    %v161 = vsub.f32 %v135, %v153
    %vm162 = vcmask 1040384
    %v163 = vsel %vm162, %v158, -inf
    %v164 = vmax.f32 %v154, %v163
    %v165 = vrot.slane %v164, 4
    %v166 = vmax.f32 %v164, %v165
    %v167 = vrot.slane %v166, 2
    %v168 = vmax.f32 %v166, %v167
    %v169 = vrot.slane %v168, 1
    %v170 = vmax.f32 %v168, %v169
    %v171 = vsel %vm162, %v159, -inf
    %v172 = vmax.f32 %v155, %v171
    %v173 = vrot.slane %v172, 4
    %v174 = vmax.f32 %v172, %v173
    %v175 = vrot.slane %v174, 2
    %v176 = vmax.f32 %v174, %v175
    %v177 = vrot.slane %v176, 1
    %v178 = vmax.f32 %v176, %v177
    %v179 = vsel %vm162, %v160, -inf
    %v180 = vmax.f32 %v156, %v179
    %v181 = vrot.slane %v180, 4
    %v182 = vmax.f32 %v180, %v181
    %v183 = vrot.slane %v182, 2
    %v184 = vmax.f32 %v182, %v183
    %v185 = vrot.slane %v184, 1
    %v186 = vmax.f32 %v184, %v185
    %v187 = vsel %vm162, %v161, -inf
    %v188 = vmax.f32 %v157, %v187
    %v189 = vrot.slane %v188, 4
    %v190 = vmax.f32 %v188, %v189
    %v191 = vrot.slane %v190, 2
    %v192 = vmax.f32 %v190, %v191
    %v193 = vrot.slane %v192, 1
    %v194 = vmax.f32 %v192, %v193
    %v195 = vsub.f32 %v154, %v170
    %v196 = vsub.f32 %v155, %v178
    %v197 = vsub.f32 %v156, %v186
    %v198 = vsub.f32 %v157, %v194
    %v199 = vsub.f32 %v158, %v170
    %v200 = vsub.f32 %v159, %v178
    %v201 = vsub.f32 %v160, %v186
    %v202 = vsub.f32 %v161, %v194
    %v203 = vmul.f32 %v195, 1.442695
    %v204 = vpow.pop %v203
    %v205 = vmul.f32 %v196, 1.442695
    %v206 = vpow.pop %v205
    %v207 = vmul.f32 %v197, 1.442695
    %v208 = vpow.pop %v207
    %v209 = vmul.f32 %v198, 1.442695
    %v210 = vpow.pop %v209
    %v211 = vmul.f32 %v199, 1.442695
    %v212 = vpow.pop %v211
    %v213 = vmul.f32 %v200, 1.442695
    %v214 = vpow.pop %v213
    %v215 = vmul.f32 %v201, 1.442695
    %v216 = vpow.pop %v215
    %v217 = vmul.f32 %v202, 1.442695
    %v218 = vpow.pop %v217
    %v219 = vsel %vm162, %v212, 0.0
    %v220 = vadd.f32 %v204, %v219
    %v221 = vrot.slane %v220, 4
    %v222 = vadd.f32 %v220, %v221
    %v223 = vrot.slane %v222, 2
    %v224 = vadd.f32 %v222, %v223
    %v225 = vrot.slane %v224, 1
    %v226 = vadd.f32 %v224, %v225
    %v227 = vsel %vm162, %v214, 0.0
    %v228 = vadd.f32 %v206, %v227
    %v229 = vrot.slane %v228, 4
    %v230 = vadd.f32 %v228, %v229
    %v231 = vrot.slane %v230, 2
    %v232 = vadd.f32 %v230, %v231
    %v233 = vrot.slane %v232, 1
    %v234 = vadd.f32 %v232, %v233
    %v235 = vsel %vm162, %v216, 0.0
    %v236 = vadd.f32 %v208, %v235
    %v237 = vrot.slane %v236, 4
    %v238 = vadd.f32 %v236, %v237
    %v239 = vrot.slane %v238, 2
    %v240 = vadd.f32 %v238, %v239
    %v241 = vrot.slane %v240, 1
    %v242 = vadd.f32 %v240, %v241
    %v243 = vsel %vm162, %v218, 0.0
    %v244 = vadd.f32 %v210, %v243
    %v245 = vrot.slane %v244, 4
    %v246 = vadd.f32 %v244, %v245
    %v247 = vrot.slane %v246, 2
    %v248 = vadd.f32 %v246, %v247
    %v249 = vrot.slane %v248, 1
    %v250 = vadd.f32 %v248, %v249
    %v251 = vlog2.pop %v226
    %v252 = vmul.f32 %v251, 0.6931472
    %v253 = vlog2.pop %v234
    %v254 = vmul.f32 %v253, 0.6931472
    %v255 = vlog2.pop %v242
    %v256 = vmul.f32 %v255, 0.6931472
    %v257 = vlog2.pop %v250
    %v258 = vmul.f32 %v257, 0.6931472
    %v259 = vadd.f32 %v252, %v170
    %v260 = vadd.f32 %v254, %v178
    %v261 = vadd.f32 %v256, %v186
    %v262 = vadd.f32 %v258, %v194
    %v263 = vsel %vm120, %v154, 0.0
    %v264 = vsel %vm121, %v155, 0.0
    %v265 = vsel %vm122, %v156, 0.0
    %v266 = vsel %vm123, %v157, 0.0
    %v267 = vsel %vm124, %v158, 0.0
    %v268 = vsel %vm125, %v159, 0.0
    %v269 = vsel %vm126, %v160, 0.0
    %v270 = vsel %vm127, %v161, 0.0
    %v271 = vsel %vm162, %v267, 0.0
    %v272 = vadd.f32 %v263, %v271
    %v273 = vrot.slane %v272, 4
    %v274 = vadd.f32 %v272, %v273
    %v275 = vrot.slane %v274, 2
    %v276 = vadd.f32 %v274, %v275
    %v277 = vrot.slane %v276, 1
    %v278 = vadd.f32 %v276, %v277
    %v279 = vsel %vm162, %v268, 0.0
    %v280 = vadd.f32 %v264, %v279
    %v281 = vrot.slane %v280, 4
    %v282 = vadd.f32 %v280, %v281
    %v283 = vrot.slane %v282, 2
    %v284 = vadd.f32 %v282, %v283
    %v285 = vrot.slane %v284, 1
    %v286 = vadd.f32 %v284, %v285
    %v287 = vsel %vm162, %v269, 0.0
    %v288 = vadd.f32 %v265, %v287
    %v289 = vrot.slane %v288, 4
    %v290 = vadd.f32 %v288, %v289
    %v291 = vrot.slane %v290, 2
    %v292 = vadd.f32 %v290, %v291
    %v293 = vrot.slane %v292, 1
    %v294 = vadd.f32 %v292, %v293
    %v295 = vsel %vm162, %v270, 0.0
    %v296 = vadd.f32 %v266, %v295
    %v297 = vrot.slane %v296, 4
    %v298 = vadd.f32 %v296, %v297
    %v299 = vrot.slane %v298, 2
    %v300 = vadd.f32 %v298, %v299
    %v301 = vrot.slane %v300, 1
    %v302 = vadd.f32 %v300, %v301
    %v303 = vsub.f32 %v259, %v278
    %v304 = vsub.f32 %v260, %v286
    %v305 = vsub.f32 %v261, %v294
    %v306 = vsub.f32 %v262, %v302
    %308 = vset.pattern.permute.xlu0 0
    %309 = vperm.xlu0 %308, %v70
    %v310 = vpop.permute.xlu0 %309
    %313 = vset.pattern.permute.xlu0 0
    %314 = vperm.xlu0 %313, %v71
    %v315 = vpop.permute.xlu0 %314
    %v317 = vsel %vm120, %v310, 0.0
    %v318 = vsel %vm121, %v310, 0.0
    %v319 = vsel %vm122, %v310, 0.0
    %v320 = vsel %vm123, %v310, 0.0
    %v321 = vsel %vm124, %v315, 0.0
    %v322 = vsel %vm125, %v315, 0.0
    %v323 = vsel %vm126, %v315, 0.0
    %v324 = vsel %vm127, %v315, 0.0
    %v325 = vsel %vm162, %v321, 0.0
    %v326 = vadd.f32 %v317, %v325
    %v327 = vrot.slane %v326, 4
    %v328 = vadd.f32 %v326, %v327
    %v329 = vrot.slane %v328, 2
    %v330 = vadd.f32 %v328, %v329
    %v331 = vrot.slane %v330, 1
    %v332 = vadd.f32 %v330, %v331
    %v333 = vsel %vm162, %v322, 0.0
    %v334 = vadd.f32 %v318, %v333
    %v335 = vrot.slane %v334, 4
    %v336 = vadd.f32 %v334, %v335
    %v337 = vrot.slane %v336, 2
    %v338 = vadd.f32 %v336, %v337
    %v339 = vrot.slane %v338, 1
    %v340 = vadd.f32 %v338, %v339
    %v341 = vsel %vm162, %v323, 0.0
    %v342 = vadd.f32 %v319, %v341
    %v343 = vrot.slane %v342, 4
    %v344 = vadd.f32 %v342, %v343
    %v345 = vrot.slane %v344, 2
    %v346 = vadd.f32 %v344, %v345
    %v347 = vrot.slane %v346, 1
    %v348 = vadd.f32 %v346, %v347
    %v349 = vsel %vm162, %v324, 0.0
    %v350 = vadd.f32 %v320, %v349
    %v351 = vrot.slane %v350, 4
    %v352 = vadd.f32 %v350, %v351
    %v353 = vrot.slane %v352, 2
    %v354 = vadd.f32 %v352, %v353
    %v355 = vrot.slane %v354, 1
    %v356 = vadd.f32 %v354, %v355
    %vm357 = vcmp.ne.s32.totalorder %v109, 8
    %vm358 = vcmp.ne.s32.totalorder %v110, 8
    %vm359 = vcmp.ne.s32.totalorder %v111, 8
    %vm360 = vcmp.ne.s32.totalorder %v112, 8
    %v361 = vsel %vm357, 1, 0
    %v362 = vsel %vm358, 1, 0
    %v363 = vsel %vm359, 1, 0
    %v364 = vsel %vm360, 1, 0
    %v365 = vcvt.s32.f32 %v361
    %v366 = vcvt.s32.f32 %v362
    %v367 = vcvt.s32.f32 %v363
    %v368 = vcvt.s32.f32 %v364
    %v369 = vmul.f32 %v332, %v365
    %v370 = vmul.f32 %v340, %v366
    %v371 = vmul.f32 %v348, %v367
    %v372 = vmul.f32 %v356, %v368
    %v373 = vmul.f32 %v303, %v369
    %v374 = vmul.f32 %v304, %v370
    %v375 = vmul.f32 %v305, %v371
    %v376 = vmul.f32 %v306, %v372
    %v377 = vsel %vm162, %v373, 0.0
    %v378 = vsel %vm162, %v374, 0.0
    %v379 = vadd.f32 %v377, %v378
    %v380 = vsel %vm162, %v375, 0.0
    %v381 = vadd.f32 %v379, %v380
    %v382 = vsel %vm162, %v376, 0.0
    %v383 = vadd.f32 %v381, %v382
    %384 = vadd.xlane.f32.xlu0 %v383
    %v385 = vpop.xlane.xlu0 %384
    %v386 = vrot.slane %v385, 4
    %v387 = vadd.f32 %v385, %v386
    %v388 = vrot.slane %v387, 2
    %v389 = vadd.f32 %v387, %v388
    %v390 = vrot.slane %v389, 1
    %v391 = vadd.f32 %v389, %v390
    %s392 = vtos %v391
    %v393 = vsel %vm162, %v369, 0.0
    %v394 = vsel %vm162, %v370, 0.0
    %v395 = vadd.f32 %v393, %v394
    %v396 = vsel %vm162, %v371, 0.0
    %v397 = vadd.f32 %v395, %v396
    %v398 = vsel %vm162, %v372, 0.0
    %v399 = vadd.f32 %v397, %v398
    %400 = vadd.xlane.f32.xlu0 %v399
    %v401 = vpop.xlane.xlu0 %400
    %v402 = vrot.slane %v401, 4
    %v403 = vadd.f32 %v401, %v402
    %v404 = vrot.slane %v403, 2
    %v405 = vadd.f32 %v403, %v404
    %v406 = vrot.slane %v405, 1
    %v407 = vadd.f32 %v405, %v406
    %s408 = vtos %v407
    %vm409 = vcmp.eq.s32.totalorder %v114, 0
    %v410 = vstv %s392
    %v411 = vstv %s408
    %v412 = vsel %vm409, %v410, %v411
    %413 = vst [vmem:[#allocation5] sm:$0xff] %v412
    // Predicated region
    $region56: #{tpu_custom_call.1} parent=1 // pred_check
      _
    $region57: #{tpu_custom_call.1} parent=1 // pred_check_branch
      %415 = sbr.rel (0) target = $region59
    $region58: #{tpu_custom_call.1} parent=1 // pred_region
      %417 = vsyncadd [#allocation6], 0
      %s419 = sshll.u32 [#allocation5], 4
      %s420 = int_to_ptr.vmem [resolvable:$true] %s419
      %s421 = sshll.u32 %s5, 4
      %s422 = int_to_ptr.hbm [resolvable:$true] %s421
      %424 = dma.vmem_to_hbm [thread:$0]  %s420, 128, %s422, [#allocation6]
    $region59: #{tpu_custom_call.1} parent=1 // pred_fallthru
      _
    // Predicated region
    $region60: #{tpu_custom_call.1} parent=1 // pred_check
      _
    $region61: #{tpu_custom_call.1} parent=1 // pred_check_branch
      %426 = sbr.rel (0) target = $region63
    $region62: #{tpu_custom_call.1} parent=1 // pred_region
      %428 = dma.done [#allocation6], 128
    $region63: #{tpu_custom_call.1} parent=1 // pred_fallthru
      _
    %429 = vsyncpa [#allocation6], 1

</llo_original>
